<compile_context>
chip_gen: v7x
topology: tpu7x:2x2x1
jax: 0.10.0
libtpu: 0.0.40
codegen_flags: <defaults>
</compile_context>

<pallas_src>
import functools

import jax
import jax.numpy as jnp
from jax.experimental import pallas as pl
from jax.experimental.pallas import tpu as pltpu

_LANE = 128
_VMEM_BUDGET = 48 * 1024 * 1024      # conservative per-step budget (v7x: 64 MiB physical VMEM)
_ONEHOT_MAX_VOCAB = 1024             # beyond this the O(V) one-hot loses to the DMA row gather
_GATHER_MAX_ROWS = 32                # rows gathered per grid step (static DMA unroll, per-row sems)


def _round_up(x, m):
    return (x + m - 1) // m * m


# ---------------------------------------------------------------------------
# Parameter setup (run ONCE, not per forward call)
# ---------------------------------------------------------------------------
def prepare_token_table(tok_table):
    """Pad the vocab axis to a multiple of 128 once at parameter-setup time.

    Only useful for the small-vocab one-hot path (lane-dense contraction); the
    DMA-gather path uses the table unpadded.  Doing this inside the forward
    would burn HBM bandwidth copying the whole table every call.
    """
    v, _ = tok_table.shape
    vp = _round_up(v, _LANE)
    if vp != v:
        tok_table = jnp.pad(tok_table, ((0, vp - v), (0, 0)))
    return tok_table


# ---------------------------------------------------------------------------
# Small-vocab path: one-hot @ table on the MXU
# ---------------------------------------------------------------------------
def _onehot_embed_kernel(ids_ref, tok_tab_ref, pos_ref, out_ref):
    # ids_ref     : (1, 1, BS) int32  ids for this (batch row, seq block)
    # tok_tab_ref : (Vp, E)           token table (VMEM resident across grid)
    # pos_ref     : (BS, E)           position rows for this seq block
    # out_ref     : (1, BS, E)
    vp, _ = tok_tab_ref.shape
    bs = out_ref.shape[1]

    ids = ids_ref[0, 0, :]                                    # (BS,) tiny

    # Lane-dense one-hot built directly in 2-D (no big 3-D->2-D relayout).
    # Padded vocab columns never match (ids < V <= Vp) so they contribute zero.
    # NOTE: out-of-range / negative ids silently give a zero token row instead
    # of erroring like PyTorch; validate ids upstream if that matters.
    onehot = (jax.lax.broadcasted_iota(jnp.int32, (bs, vp), 1)
              == ids[:, None]).astype(tok_tab_ref.dtype)

    # Gather-as-matmul on the MXU (exact row select: one nonzero per row).
    tok = jnp.dot(onehot, tok_tab_ref[...], preferred_element_type=jnp.float32)

    # Position contribution is a direct table slice; fuse the add on the VPU.
    out = tok + pos_ref[...].astype(jnp.float32)
    out_ref[...] = out[None, :, :].astype(out_ref.dtype)


def _onehot_vmem_bytes(bs_blk, e, vp, itemsize, table_buffers):
    table = table_buffers * vp * e * itemsize        # VMEM-resident token table
    out = 2 * bs_blk * e * itemsize                  # double-buffered output blocks
    pos = 2 * bs_blk * e * itemsize                  # double-buffered position blocks
    ids = 2 * bs_blk * 4                             # double-buffered id blocks
    scratch = bs_blk * vp * 4 + bs_blk * e * 4       # one-hot + dot-result intermediates
    return table + out + pos + ids + scratch


def _pick_seq_block_onehot(b, s, e, vp, itemsize):
    # MXU-aligned (multiples of 256 feed the v6e/v7x 256-deep MXU full-width,
    # 128 the v5e MXU), lane-friendly blocks that divide S and fit VMEM.
    candidates = [c for c in (1024, 512, 256, 128) if s % c == 0]
    if b == 1 and len(candidates) > 1:
        # No batch grid axis to shard -> keep >= 2 sequence blocks so both v7x
        # TensorCores get work.
        candidates = [c for c in candidates if c <= s // 2] or candidates
    for c in candidates:
        if _onehot_vmem_bytes(c, e, vp, itemsize, 1) <= _VMEM_BUDGET:
            return c
    return s      # small / odd S: one block per batch row (constraint: S % 8 == 0 or S == max_len)


@functools.partial(jax.jit, static_argnames=("table_buffer_count",))
def _onehot_path(ids, tok_table, pos_table, table_buffer_count=1):
    b, s = ids.shape
    vp, e = tok_table.shape
    itemsize = jnp.dtype(tok_table.dtype).itemsize

    bs_blk = _pick_seq_block_onehot(b, s, e, vp, itemsize)
    grid = (b, s // bs_blk)

    # ids as (B, 1, S): keeps the batch axis out of the (sublane, lane) block
    # dims so a batch block of 1 is always layout-legal.
    ids3 = ids.reshape(b, 1, s)

    tok_spec_kwargs = {}
    if table_buffer_count is not None:
        # Constant index_map -> table stays VMEM resident across all grid
        # steps; single-buffer it so it is not allocated twice.
        tok_spec_kwargs["pipeline_mode"] = pl.Buffered(buffer_count=table_buffer_count)

    vmem_need = _onehot_vmem_bytes(bs_blk, e, vp, itemsize,
                                   1 if table_buffer_count == 1 else 2)
    vmem_limit = int(min(max(vmem_need * 5 // 4, 16 * 2**20), 64 * 2**20))

    return pl.pallas_call(
        _onehot_embed_kernel,
        out_shape=jax.ShapeDtypeStruct((b, s, e), tok_table.dtype),
        grid=grid,
        in_specs=[
            pl.BlockSpec((1, 1, bs_blk), lambda bb, sb: (bb, 0, sb)),
            pl.BlockSpec((vp, e), lambda bb, sb: (0, 0), **tok_spec_kwargs),
            pl.BlockSpec((bs_blk, e), lambda bb, sb: (sb, 0)),
        ],
        out_specs=pl.BlockSpec((1, bs_blk, e), lambda bb, sb: (bb, sb, 0)),
        compiler_params=pltpu.CompilerParams(
            dimension_semantics=("parallel", "parallel"),
            vmem_limit_bytes=vmem_limit),
    )(ids3, tok_table, pos_table)


# ---------------------------------------------------------------------------
# Large-vocab path: scalar-prefetched DMA row gather (table stays in HBM)
# ---------------------------------------------------------------------------
def _gather_embed_kernel(ids_ref, tok_hbm, pos_ref, out_ref, gbuf, sems):
    # ids_ref : (B*S,) int32 in SMEM (scalar-prefetched)
    # tok_hbm : (V, E) table in HBM (memory_space=ANY), rows DMA'd on demand
    # pos_ref : (ROWS, E) VMEM, position rows for this seq block
    # out_ref : (1, ROWS, E) VMEM
    # gbuf    : (ROWS, E) VMEM scratch;  sems: (ROWS,) DMA semaphores
    rows = gbuf.shape[0]
    s = pl.num_programs(1) * rows
    base = pl.program_id(0) * s + pl.program_id(1) * rows

    # Issue every row copy first (all in flight), then wait, then fuse the add.
    for r in range(rows):
        tok_id = ids_ref[base + r]
        pltpu.make_async_copy(tok_hbm.at[pl.ds(tok_id, 1)],
                              gbuf.at[pl.ds(r, 1)],
                              sems.at[r]).start()
    for r in range(rows):
        pltpu.make_async_copy(tok_hbm.at[pl.ds(0, 1)],
                              gbuf.at[pl.ds(r, 1)],
                              sems.at[r]).wait()

    out = gbuf[...].astype(jnp.float32) + pos_ref[...].astype(jnp.float32)
    out_ref[...] = out[None, :, :].astype(out_ref.dtype)


def _pick_seq_block_gather(s):
    for c in (_GATHER_MAX_ROWS, 16, 8):
        if s % c == 0:
            return c
    return s


@jax.jit
def _gather_path(ids, tok_table, pos_table):
    b, s = ids.shape
    _, e = tok_table.shape
    out_itemsize = jnp.dtype(tok_table.dtype).itemsize

    rows = _pick_seq_block_gather(s)
    grid = (b, s // rows)

    vmem_need = (2 * rows * e * out_itemsize        # double-buffered out blocks
                 + 2 * rows * e * out_itemsize      # double-buffered pos blocks
                 + rows * e * out_itemsize          # gather scratch
                 + 2 * rows * e * 4)                # f32 add intermediates
    vmem_limit = int(min(max(vmem_need * 2, 16 * 2**20), 64 * 2**20))

    grid_spec = pltpu.PrefetchScalarGridSpec(
        num_scalar_prefetch=1,
        grid=grid,
        in_specs=[
            pl.BlockSpec(memory_space=pl.ANY),                        # token table stays in HBM
            pl.BlockSpec((rows, e), lambda bb, sb, ids_s: (sb, 0)),   # position rows for this block
        ],
        out_specs=pl.BlockSpec((1, rows, e), lambda bb, sb, ids_s: (bb, sb, 0)),
        scratch_shapes=[
            pltpu.VMEM((rows, e), tok_table.dtype),
            pltpu.SemaphoreType.DMA((rows,)),
        ],
    )

    return pl.pallas_call(
        _gather_embed_kernel,
        out_shape=jax.ShapeDtypeStruct((b, s, e), tok_table.dtype),
        grid_spec=grid_spec,
        compiler_params=pltpu.CompilerParams(
            dimension_semantics=("parallel", "parallel"),
            vmem_limit_bytes=vmem_limit),
    )(ids.reshape(b * s), tok_table, pos_table)


# ---------------------------------------------------------------------------
# Public forward
# ---------------------------------------------------------------------------
def embedding_layer(x, tok_table, pos_table):
    """x: (B, S) int token ids -> (B, S, E) embeddings (token + position)."""
    b, s = x.shape
    v, e = tok_table.shape
    max_len = pos_table.shape[0]
    assert s <= max_len, "sequence length exceeds max_len of position table"

    ids = x.astype(jnp.int32)
    itemsize = jnp.dtype(tok_table.dtype).itemsize
    table_fits_vmem = v * e * itemsize <= _VMEM_BUDGET // 2

    if v <= _ONEHOT_MAX_VOCAB and table_fits_vmem:
        try:
            return _onehot_path(ids, tok_table, pos_table, table_buffer_count=1)
        except Exception:
            # Graceful fallback if this jax version rejects single-buffered
            # pipeline_mode on the VMEM-resident table spec.
            return _onehot_path(ids, tok_table, pos_table, table_buffer_count=None)
    return _gather_path(ids, tok_table, pos_table)


if __name__ == "__main__":
    key = jax.random.PRNGKey(0)
    k_tok, k_pos, k_x, k_tok2, k_x2 = jax.random.split(key, 5)

    # Small config (one-hot MXU gather path), consistent with the module.
    vocab_size, embed_dim, max_len = 64, 128, 16
    batch, seq = 2, 8

    # nn.Embedding default init: N(0, 1).
    tok_table = jax.random.normal(k_tok, (vocab_size, embed_dim), jnp.float32)
    pos_table = jax.random.normal(k_pos, (max_len, embed_dim), jnp.float32)
    x = jax.random.randint(k_x, (batch, seq), 0, vocab_size, dtype=jnp.int32)

    tok_table_p = prepare_token_table(tok_table)   # pad once at setup, not per call
    out = jax.block_until_ready(embedding_layer(x, tok_table_p, pos_table))
    ref = tok_table[x] + pos_table[jnp.arange(seq)][None, :, :]
    assert out.shape == (batch, seq, embed_dim)
    assert jnp.allclose(out, ref, atol=1e-5, rtol=1e-5)

    # Larger vocab exercises the scalar-prefetched DMA row-gather path.
    big_vocab = 4096
    tok_big = jax.random.normal(k_tok2, (big_vocab, embed_dim), jnp.float32)
    x_big = jax.random.randint(k_x2, (batch, seq), 0, big_vocab, dtype=jnp.int32)
    out_big = jax.block_until_ready(embedding_layer(x_big, tok_big, pos_table))
    ref_big = tok_big[x_big] + pos_table[jnp.arange(seq)][None, :, :]
    assert jnp.allclose(out_big, ref_big, atol=1e-5, rtol=1e-5)

    print("KERNEL_OK")
</pallas_src>

<mosaic_0001>
module attributes {stable_mosaic.version = 11 : i64} {
  func.func @_onehot_embed_kernel(%arg0: i32, %arg1: i32, %arg2: memref<1x1x8xi32, #tpu.memory_space<vmem>>, %arg3: memref<128x128xf32, #tpu.memory_space<vmem>>, %arg4: memref<8x128xf32, #tpu.memory_space<vmem>>, %arg5: memref<1x8x128xf32, #tpu.memory_space<vmem>>) attributes {dimension_semantics = [#tpu.dimension_semantics<parallel>, #tpu.dimension_semantics<parallel>], iteration_bounds = array<i64: 2, 1>, scalar_prefetch = 0 : i64, scratch_operands = 0 : i64, tpu.core_type = #tpu.core_type<tc>, window_params = [{transform_indices = @transform_0, window_bounds = array<i64: 1, 1, 8>}, {pipeline_mode = #tpu.pipeline_mode<synchronous>, transform_indices = @transform_1, window_bounds = array<i64: 128, 128>}, {transform_indices = @transform_2, window_bounds = array<i64: 8, 128>}, {transform_indices = @transform_3, window_bounds = array<i64: 1, 8, 128>}]} {
    %c0 = arith.constant 0 : index
    %c0_0 = arith.constant 0 : index
    %c0_1 = arith.constant 0 : index
    %0 = vector.load %arg2[%c0, %c0_0, %c0_1] : memref<1x1x8xi32, #tpu.memory_space<vmem>>, vector<1x1x8xi32>
    %1 = vector.shape_cast %0 : vector<1x1x8xi32> to vector<8xi32>
    %2 = tpu.iota {dimensions = array<i32: 1>} : vector<8x128xi32>
    %3 = vector.shape_cast %1 : vector<8xi32> to vector<8x1xi32>
    %4 = vector.broadcast %3 : vector<8x1xi32> to vector<8x128xi32>
    %5 = arith.cmpi eq, %2, %4 : vector<8x128xi32>
    %6 = arith.extui %5 : vector<8x128xi1> to vector<8x128xi32>
    %7 = arith.sitofp %6 : vector<8x128xi32> to vector<8x128xf32>
    %c0_2 = arith.constant 0 : index
    %c0_3 = arith.constant 0 : index
    %8 = vector.load %arg3[%c0_2, %c0_3] : memref<128x128xf32, #tpu.memory_space<vmem>>, vector<128x128xf32>
    %cst = arith.constant dense<0.000000e+00> : vector<8x128xf32>
    %9 = tpu.matmul %7, %8, %cst {dimension_numbers = #tpu.dot_dimension_numbers<[1], [0], [0], [1], [0, 0, 1, 1], [], []>} : vector<8x128xf32>, vector<128x128xf32>, vector<8x128xf32> -> vector<8x128xf32>
    %c0_4 = arith.constant 0 : index
    %c0_5 = arith.constant 0 : index
    %10 = vector.load %arg4[%c0_4, %c0_5] : memref<8x128xf32, #tpu.memory_space<vmem>>, vector<8x128xf32>
    %11 = arith.addf %9, %10 : vector<8x128xf32>
    %12 = vector.shape_cast %11 : vector<8x128xf32> to vector<1x8x128xf32>
    %c0_6 = arith.constant 0 : index
    %c0_7 = arith.constant 0 : index
    %c0_8 = arith.constant 0 : index
    %13 = vector.load %arg5[%c0_6, %c0_7, %c0_8] : memref<1x8x128xf32, #tpu.memory_space<vmem>>, vector<1x8x128xf32>
    tpu.vector_store %arg5[%c0_6, %c0_7, %c0_8], %12 {strides = array<i32>} : memref<1x8x128xf32, #tpu.memory_space<vmem>>, vector<1x8x128xf32>,
    return
  }
  func.func @transform_0(%arg0: i32, %arg1: i32) -> (i32, i32, i32) {
    %c0_i32 = arith.constant 0 : i32
    %c0_i32_0 = arith.constant 0 : i32
    return %arg0, %c0_i32, %arg1 : i32, i32, i32
  }
  func.func @transform_1(%arg0: i32, %arg1: i32) -> (i32, i32) {
    %c0_i32 = arith.constant 0 : i32
    %c0_i32_0 = arith.constant 0 : i32
    %c0_i32_1 = arith.constant 0 : i32
    return %c0_i32, %c0_i32_0 : i32, i32
  }
  func.func @transform_2(%arg0: i32, %arg1: i32) -> (i32, i32) {
    %c0_i32 = arith.constant 0 : i32
    %c0_i32_0 = arith.constant 0 : i32
    return %arg1, %c0_i32 : i32, i32
  }
  func.func @transform_3(%arg0: i32, %arg1: i32) -> (i32, i32, i32) {
    %c0_i32 = arith.constant 0 : i32
    %c0_i32_0 = arith.constant 0 : i32
    return %arg0, %arg1, %c0_i32 : i32, i32, i32
  }
}

module attributes {stable_mosaic.version = 11 : i64} {
  func.func @_onehot_embed_kernel(%arg0: i32, %arg1: i32, %arg2: memref<1x1x8xi32, #tpu.memory_space<vmem>>, %arg3: memref<128x128xf32, #tpu.memory_space<vmem>>, %arg4: memref<8x128xf32, #tpu.memory_space<vmem>>, %arg5: memref<1x8x128xf32, #tpu.memory_space<vmem>>) attributes {dimension_semantics = [#tpu.dimension_semantics<parallel>, #tpu.dimension_semantics<parallel>], iteration_bounds = array<i64: 2, 1>, scalar_prefetch = 0 : i64, scratch_operands = 0 : i64, tpu.core_type = #tpu.core_type<tc>, window_params = [{transform_indices = @transform_0, window_bounds = array<i64: 1, 1, 8>}, {pipeline_mode = #tpu.pipeline_mode<synchronous>, transform_indices = @transform_1, window_bounds = array<i64: 128, 128>}, {transform_indices = @transform_2, window_bounds = array<i64: 8, 128>}, {transform_indices = @transform_3, window_bounds = array<i64: 1, 8, 128>}]} {
    %c0 = arith.constant 0 : index
    %c0_0 = arith.constant 0 : index
    %c0_1 = arith.constant 0 : index
    %0 = vector.load %arg2[%c0, %c0_0, %c0_1] : memref<1x1x8xi32, #tpu.memory_space<vmem>>, vector<1x1x8xi32>
    %1 = vector.shape_cast %0 : vector<1x1x8xi32> to vector<8xi32>
    %2 = tpu.iota {dimensions = array<i32: 1>} : vector<8x128xi32>
    %3 = vector.shape_cast %1 : vector<8xi32> to vector<8x1xi32>
    %4 = vector.broadcast %3 : vector<8x1xi32> to vector<8x128xi32>
    %5 = arith.cmpi eq, %2, %4 : vector<8x128xi32>
    %6 = arith.extui %5 : vector<8x128xi1> to vector<8x128xi32>
    %7 = arith.sitofp %6 : vector<8x128xi32> to vector<8x128xf32>
    %c0_2 = arith.constant 0 : index
    %c0_3 = arith.constant 0 : index
    %8 = vector.load %arg3[%c0_2, %c0_3] : memref<128x128xf32, #tpu.memory_space<vmem>>, vector<128x128xf32>
    %cst = arith.constant dense<0.000000e+00> : vector<8x128xf32>
    %9 = tpu.matmul %7, %8, %cst {dimension_numbers = #tpu.dot_dimension_numbers<[1], [0], [0], [1], [0, 0, 1, 1], [], []>} : vector<8x128xf32>, vector<128x128xf32>, vector<8x128xf32> -> vector<8x128xf32>
    %c0_4 = arith.constant 0 : index
    %c0_5 = arith.constant 0 : index
    %10 = vector.load %arg4[%c0_4, %c0_5] : memref<8x128xf32, #tpu.memory_space<vmem>>, vector<8x128xf32>
    %11 = arith.addf %9, %10 : vector<8x128xf32>
    %12 = vector.shape_cast %11 : vector<8x128xf32> to vector<1x8x128xf32>
    %c0_6 = arith.constant 0 : index
    %c0_7 = arith.constant 0 : index
    %c0_8 = arith.constant 0 : index
    %13 = vector.load %arg5[%c0_6, %c0_7, %c0_8] : memref<1x8x128xf32, #tpu.memory_space<vmem>>, vector<1x8x128xf32>
    tpu.vector_store %arg5[%c0_6, %c0_7, %c0_8], %12 {strides = array<i32>} : memref<1x8x128xf32, #tpu.memory_space<vmem>>, vector<1x8x128xf32>,
    return
  }
  func.func @transform_0(%arg0: i32, %arg1: i32) -> (i32, i32, i32) {
    %c0_i32 = arith.constant 0 : i32
    %c0_i32_0 = arith.constant 0 : i32
    return %arg0, %c0_i32, %arg1 : i32, i32, i32
  }
  func.func @transform_1(%arg0: i32, %arg1: i32) -> (i32, i32) {
    %c0_i32 = arith.constant 0 : i32
    %c0_i32_0 = arith.constant 0 : i32
    %c0_i32_1 = arith.constant 0 : i32
    return %c0_i32, %c0_i32_0 : i32, i32
  }
  func.func @transform_2(%arg0: i32, %arg1: i32) -> (i32, i32) {
    %c0_i32 = arith.constant 0 : i32
    %c0_i32_0 = arith.constant 0 : i32
    return %arg1, %c0_i32 : i32, i32
  }
  func.func @transform_3(%arg0: i32, %arg1: i32) -> (i32, i32, i32) {
    %c0_i32 = arith.constant 0 : i32
    %c0_i32_0 = arith.constant 0 : i32
    return %arg0, %arg1, %c0_i32 : i32, i32, i32
  }
}

</mosaic_0001>

<llo_original>
// kernel: _onehot_path.1
$region0: #{_onehot_path.1}
  #allocation0 [shape = 'u32[]', space=smem, size = 0x4, offset = 0x4, fixed_abs, tag = 'smem constant byte address 0x4 - core index']
  #allocation1 [shape = 'u32[144,128]{1,0:T(1,128)}', space=vmem, size = 0x12000, scoped, tag = 'internal scratch']
  %s0 = inlined_call_operand.vmem [shape: s32[2,1,8], index: 0, kind: input, shape index: {}]
  %s1 = inlined_call_operand.hbm [shape: f32[128,128], index: 1, kind: input, shape index: {}]
  %s2 = inlined_call_operand.hbm [shape: f32[16,128], index: 2, kind: input, shape index: {}]
  %s3 = inlined_call_operand.hbm [shape: f32[2,8,128], index: 3, kind: output, shape index: {}]
  %s4 = sld [smem:[#allocation0]]
  $region53: #{_onehot_path.1} parent=0
    _
  %s6 = ssub.s32 1, %s4
  %s7 = scalar_select 0, %s6, %s4
  $region1: #{_onehot_path.1} parent=0
    #allocation2 [shape = 'u8[65536]{0}', space=vmem, size = 0x10000, scoped, tag = 'input window, operand 1, single buffered']
    #allocation3 [shape = 's32[2]{0}', space=sflag, size = 0x8, scoped, tag = 'scoped memory for _onehot_path.1']
    #allocation4 [shape = 's32[2]{0}', space=sflag, size = 0x8, scoped, tag = 'scoped memory for _onehot_path.1']
    #allocation5 [shape = 'u8[4096]{0}', space=vmem, size = 0x1000, scoped, tag = 'input window, operand 2, single buffered']
    #allocation6 [shape = 's32[1]{0}', space=sflag, size = 0x4, scoped, tag = 'scoped memory for _onehot_path.1']
    #allocation7 [shape = 'u8[8192]{0}', space=vmem, size = 0x2000, scoped, tag = 'output window, operand 0']
    %8 = vsyncpa [#allocation3], 0
    %9 = vsyncpa [#allocation6], 0
    %10 = vsyncpa [#allocation4], 0
    %s11 = scalar_lea.sflag [#allocation4], 1
    %12 = vsyncpa %s11, 0
    loop: start=0, step=1, limit=4
    $region2: #{_onehot_path.1} parent=1 // loop_pre_header
      _
    $region3: #{_onehot_path.1} parent=1 // loop_header
      %s14 = sphi 0, %s18
      %p15 = scmp.ge.s32.totalorder %s14, 4
      %s21 = sphi 0, %s33
      %s22 = sphi 0, %s29
      %s23 = sphi 0, %s21
      %s24 = sphi 0, %s22
      %s25 = sphi 0, %s23
      %s26 = sphi 0, %s24
      %s38 = sphi 0, %s40
      %s41 = sphi 0, %s38
      %s42 = sphi 0, %s41
      %s58 = sphi 0, %s42
      %s62 = sphi 0, %s62
      %s64 = sphi 0, %s62
      %s65 = sphi 0, %s64
      %s79 = sphi 0, %s65
      %s85 = sphi 0, %s87
      %s88 = sphi 0, %s85
      %s89 = sphi 0, %s88
      %s105 = sphi 0, %s89
      %s113 = sphi 0, %s115
      %s116 = sphi 0, %s113
      %s117 = sphi 0, %s116
      %s133 = sphi 0, %s117
    $region4: #{_onehot_path.1} parent=1 // loop_header_branch
      %17 = sbr.rel (%p15) target = $region8
    $region5: #{_onehot_path.1} parent=1 // loop_body
      %s19 = ssub.s32 %s14, 1
      %s20 = ssub.s32 %s14, 2
      %s27 = sadd.s32 1, %s22
      %p28 = scmp.ge.s32.totalorder %s27, 1
      %s29 = scalar_select %p28, 0, %s27
      %s30 = sadd.s32 1, %s21
      %s31 = scalar_select %p28, %s30, %s21
      %p32 = scmp.ge.s32.totalorder %s31, 2
      %s33 = scalar_select %p32, 0, %s31
      %s34 = ssub.s32 %s21, %s33
      %s35 = ssub.s32 %s22, %s29
      %s36 = sor.u32 %s34, %s35
      %p37 = scmp.eq.s32.totalorder %s36, 0
      %s39 = sadd.s32 %s38, 1
      %s40 = scalar_select %p37, %s38, %s39
      %p43 = pneg %p37
      %p44 = scmp.eq.s32.totalorder %s14, 1
      %p45 = por %p43, %p44
      %p46 = scmp.ne.s32.totalorder %s38, %s41
      %p47 = scmp.eq.s32.totalorder %s14, 0
      %p48 = por %p46, %p47
      %p49 = scmp.ne.s32.totalorder %s38, %s41
      %p50 = scmp.eq.s32.totalorder %s19, 1
      %p51 = por %p49, %p50
      %p52 = scmp.ne.s32.totalorder %s41, %s42
      %p53 = scmp.eq.s32.totalorder %s19, 0
      %p54 = por %p52, %p53
      %p55 = scmp.ne.s32.totalorder %s41, %s42
      %p56 = scmp.eq.s32.totalorder %s20, 1
      %p57 = por %p55, %p56
      %p59 = scmp.ne.s32.totalorder %s42, %s58
      %p60 = scmp.eq.s32.totalorder %s20, 0
      %p61 = por %p59, %p60
      %s63 = sadd.s32 %s62, 1
      %p66 = scmp.eq.s32.totalorder %s14, 1
      %p67 = scmp.ne.s32.totalorder %s62, %s64
      %p68 = scmp.eq.s32.totalorder %s14, 0
      %p69 = por %p67, %p68
      %p70 = scmp.ne.s32.totalorder %s62, %s64
      %p71 = scmp.eq.s32.totalorder %s19, 1
      %p72 = por %p70, %p71
      %p73 = scmp.ne.s32.totalorder %s64, %s65
      %p74 = scmp.eq.s32.totalorder %s19, 0
      %p75 = por %p73, %p74
      %p76 = scmp.ne.s32.totalorder %s64, %s65
      %p77 = scmp.eq.s32.totalorder %s20, 1
      %p78 = por %p76, %p77
      %p80 = scmp.ne.s32.totalorder %s65, %s79
      %p81 = scmp.eq.s32.totalorder %s20, 0
      %p82 = por %p80, %p81
      %s83 = ssub.s32 %s22, %s29
      %p84 = scmp.eq.s32.totalorder %s83, 0
      %s86 = sadd.s32 %s85, 1
      %s87 = scalar_select %p84, %s85, %s86
      %p90 = pneg %p84
      %p91 = scmp.eq.s32.totalorder %s14, 1
      %p92 = por %p90, %p91
      %p93 = scmp.ne.s32.totalorder %s85, %s88
      %p94 = scmp.eq.s32.totalorder %s14, 0
      %p95 = por %p93, %p94
      %p96 = scmp.ne.s32.totalorder %s85, %s88
      %p97 = scmp.eq.s32.totalorder %s19, 1
      %p98 = por %p96, %p97
      %p99 = scmp.ne.s32.totalorder %s88, %s89
      %p100 = scmp.eq.s32.totalorder %s19, 0
      %p101 = por %p99, %p100
      %p102 = scmp.ne.s32.totalorder %s88, %s89
      %p103 = scmp.eq.s32.totalorder %s20, 1
      %p104 = por %p102, %p103
      %p106 = scmp.ne.s32.totalorder %s89, %s105
      %p107 = scmp.eq.s32.totalorder %s20, 0
      %p108 = por %p106, %p107
      %s109 = ssub.s32 %s21, %s33
      %s110 = ssub.s32 %s22, %s29
      %s111 = sor.u32 %s109, %s110
      %p112 = scmp.eq.s32.totalorder %s111, 0
      %s114 = sadd.s32 %s113, 1
      %s115 = scalar_select %p112, %s113, %s114
      %p118 = pneg %p112
      %p119 = scmp.eq.s32.totalorder %s14, 1
      %p120 = por %p118, %p119
      %p121 = scmp.ne.s32.totalorder %s113, %s116
      %p122 = scmp.eq.s32.totalorder %s14, 0
      %p123 = por %p121, %p122
      %p124 = scmp.ne.s32.totalorder %s113, %s116
      %p125 = scmp.eq.s32.totalorder %s19, 1
      %p126 = por %p124, %p125
      %p127 = scmp.ne.s32.totalorder %s116, %s117
      %p128 = scmp.eq.s32.totalorder %s19, 0
      %p129 = por %p127, %p128
      %p130 = scmp.ne.s32.totalorder %s116, %s117
      %p131 = scmp.eq.s32.totalorder %s20, 1
      %p132 = por %p130, %p131
      %p134 = scmp.ne.s32.totalorder %s117, %s133
      %p135 = scmp.eq.s32.totalorder %s20, 0
      %p136 = por %p134, %p135
      %p137 = scmp.le.s32.totalorder 1, %s14
      %p138 = scmp.lt.s32.totalorder %s14, 3
      %p139 = pnand %p137, %p138
      %p140 = pneg %p139
      // Predicated region
      $region9: #{_onehot_path.1} parent=5 // pred_check
        _
      $region10: #{_onehot_path.1} parent=5 // pred_check_branch
        %142 = sbr.rel (%p139) target = $region12
      $region11: #{_onehot_path.1} parent=5 // pred_region
        %s143 = ssub.s32 %s14, 1
        // Predicated region
        $region13: #{_onehot_path.1} parent=11 // pred_check
          %p144 = pneg %p75
        $region14: #{_onehot_path.1} parent=11 // pred_check_branch
          %146 = sbr.rel (%p144) target = $region16
        $region15: #{_onehot_path.1} parent=11 // pred_region
          %s148 = ssub.s32 2048, 2048
          %149 = vsyncadd [#allocation3], %s148
          %s150 = sshll.u32 [#allocation2], 4
          %s151 = int_to_ptr.vmem [resolvable:$true] %s150
          %156 = dma.hbm_to_vmem [thread:$0]  %s1, 2048, %s151, [#allocation3], 128, 128, 8
        $region16: #{_onehot_path.1} parent=11 // pred_fallthru
          _
        // Predicated region
        $region17: #{_onehot_path.1} parent=11 // pred_check
          %p157 = pneg %p101
        $region18: #{_onehot_path.1} parent=11 // pred_check_branch
          %159 = sbr.rel (%p157) target = $region20
        $region19: #{_onehot_path.1} parent=11 // pred_region
          %s161 = ssub.s32 128, 128
          %162 = vsyncadd [#allocation6], %s161
          %s163 = smul.addr %s24, 128
          %s164 = scalar_lea.hbm %s2, %s163
          %s166 = sshll.u32 [#allocation5], 4
          %s167 = int_to_ptr.vmem [resolvable:$true] %s166
          %169 = dma.hbm_to_vmem [thread:$0]  %s164, 128, %s167, [#allocation6]
        $region20: #{_onehot_path.1} parent=11 // pred_fallthru
          _
      $region12: #{_onehot_path.1} parent=5 // pred_fallthru
        _
      %p170 = scmp.lt.s32.totalorder %s14, 2
      // Predicated region
      $region21: #{_onehot_path.1} parent=5 // pred_check
        %p171 = pneg %p170
      $region22: #{_onehot_path.1} parent=5 // pred_check_branch
        %173 = sbr.rel (%p171) target = $region24
      $region23: #{_onehot_path.1} parent=5 // pred_region
        // Predicated region
        $region25: #{_onehot_path.1} parent=23 // pred_check
          %p174 = pneg %p48
        $region26: #{_onehot_path.1} parent=23 // pred_check_branch
          %176 = sbr.rel (%p174) target = $region28
        $region27: #{_onehot_path.1} parent=23 // pred_region
          %p177 = scmp.lt.s32.totalorder %s21, 1
          %s178 = scalar_select %p177, %s21, 1
          %p179 = scmp.lt.s32.totalorder %s22, 0
          %s180 = scalar_select %p179, %s22, 0
          %s181 = sadd.s32 %s180, %s178
          %s182 = scalar_lea.vmem %s0, %s181
        $region28: #{_onehot_path.1} parent=23 // pred_fallthru
          _
      $region24: #{_onehot_path.1} parent=5 // pred_fallthru
        _
      %p183 = scmp.le.s32.totalorder 1, %s14
      %p184 = scmp.lt.s32.totalorder %s14, 3
      %p185 = pnand %p183, %p184
      %p186 = pneg %p185
      // Predicated region
      $region29: #{_onehot_path.1} parent=5 // pred_check
        _
      $region30: #{_onehot_path.1} parent=5 // pred_check_branch
        %188 = sbr.rel (%p185) target = $region32
      $region31: #{_onehot_path.1} parent=5 // pred_region
        %s189 = ssub.s32 %s14, 1
        // Predicated region
        $region33: #{_onehot_path.1} parent=31 // pred_check
          %p190 = pneg %p75
        $region34: #{_onehot_path.1} parent=31 // pred_check_branch
          %192 = sbr.rel (%p190) target = $region36
        $region35: #{_onehot_path.1} parent=31 // pred_region
          %193 = dma.done [#allocation3], 2048
        $region36: #{_onehot_path.1} parent=31 // pred_fallthru
          _
        // Predicated region
        $region37: #{_onehot_path.1} parent=31 // pred_check
          %p194 = pneg %p101
        $region38: #{_onehot_path.1} parent=31 // pred_check_branch
          %196 = sbr.rel (%p194) target = $region40
        $region39: #{_onehot_path.1} parent=31 // pred_region
          %197 = dma.done [#allocation6], 128
        $region40: #{_onehot_path.1} parent=31 // pred_fallthru
          _
        %p198 = scmp.lt.s32.totalorder %s23, 1
        %s199 = scalar_select %p198, %s23, 1
        %p200 = scmp.lt.s32.totalorder %s24, 0
        %s201 = scalar_select %p200, %s24, 0
        %s202 = sadd.s32 %s201, %s199
        %s203 = scalar_lea.vmem %s0, %s202
        %p204 = pneg %p54
        %p205 = pneg %p51
        %p206 = pneg %p75
        %p207 = pneg %p72
        %p208 = pneg %p101
        %p209 = pneg %p98
        %p210 = pneg %p129
        %p211 = pneg %p126
        %s212 = sand.u32 %s116, 1
        %s213 = scalar_lea.sflag [#allocation4], %s212
        %s214 = sand.u32 %s116, 1
        %s215 = smul.addr %s214, 8
        %s216 = scalar_lea.vmem [#allocation7], %s215
        %p217 = scmp.lt.s32.totalorder %s23, 1
        %s218 = scalar_select %p217, %s23, 1
        %p219 = scmp.lt.s32.totalorder %s24, 0
        %s220 = scalar_select %p219, %s24, 0
        %s221 = sadd.s32 %s220, %s218
        %s222 = scalar_lea.vmem %s0, %s221
        %v223 = vld [vmem:[%s222] sm:$0x1]
        %v224 = vlaneseq
        %v225 = vand.u32 %v224, 127
        %v226 = vlaneseq
        %v227 = vshrl.u32 %v226, 7
        %v228 = vsub.s32 0, %v227
        %v229 = vrot.slane %v223, %v228
        %231 = vbcast.lane.b32.xlu0 %v229, 256
        %v232 = vpop.permute.xlu0 %231
        %vm233 = vcmp.eq.s32.totalorder %v225, %v232
        %v234 = vsel %vm233, 1, 0
        %v235 = vcvt.s32.f32 %v234
        %v236 = vld [vmem:[#allocation2] sm:$0xff]
        %v237 = vld [vmem:[#allocation2 + $0x8] sm:$0xff]
        %v238 = vld [vmem:[#allocation2 + $0x10] sm:$0xff]
        %v239 = vld [vmem:[#allocation2 + $0x18] sm:$0xff]
        %v240 = vld [vmem:[#allocation2 + $0x20] sm:$0xff]
        %v241 = vld [vmem:[#allocation2 + $0x28] sm:$0xff]
        %v242 = vld [vmem:[#allocation2 + $0x30] sm:$0xff]
        %v243 = vld [vmem:[#allocation2 + $0x38] sm:$0xff]
        %v244 = vld [vmem:[#allocation2 + $0x40] sm:$0xff]
        %v245 = vld [vmem:[#allocation2 + $0x48] sm:$0xff]
        %v246 = vld [vmem:[#allocation2 + $0x50] sm:$0xff]
        %v247 = vld [vmem:[#allocation2 + $0x58] sm:$0xff]
        %v248 = vld [vmem:[#allocation2 + $0x60] sm:$0xff]
        %v249 = vld [vmem:[#allocation2 + $0x68] sm:$0xff]
        %v250 = vld [vmem:[#allocation2 + $0x70] sm:$0xff]
        %v251 = vld [vmem:[#allocation2 + $0x78] sm:$0xff]
        %v252 = vld [vmem:[#allocation5] sm:$0xff]
        %253 = vmatprep.subr.mxu0 0.0
        %254 = vmatpush1.msra.mxu0 %v236
        %255 = vmatprep.subr.mxu0 0.0
        %256 = vmatpush1.msra.mxu0 %v237
        %257 = vmatprep.subr.mxu0 0.0
        %258 = vmatpush1.msra.mxu0 %v238
        %259 = vmatprep.subr.mxu0 0.0
        %260 = vmatpush1.msra.mxu0 %v239
        %261 = vmatprep.subr.mxu0 0.0
        %262 = vmatpush1.msra.mxu0 %v240
        %263 = vmatprep.subr.mxu0 0.0
        %264 = vmatpush1.msra.mxu0 %v241
        %265 = vmatprep.subr.mxu0 0.0
        %266 = vmatpush1.msra.mxu0 %v242
        %267 = vmatprep.subr.mxu0 0.0
        %268 = vmatpush1.msra.mxu0 %v243
        %269 = vmatprep.subr.mxu0 0.0
        %270 = vmatpush1.msra.mxu0 %v244
        %271 = vmatprep.subr.mxu0 0.0
        %272 = vmatpush1.msra.mxu0 %v245
        %273 = vmatprep.subr.mxu0 0.0
        %274 = vmatpush1.msra.mxu0 %v246
        %275 = vmatprep.subr.mxu0 0.0
        %276 = vmatpush1.msra.mxu0 %v247
        %277 = vmatprep.subr.mxu0 0.0
        %278 = vmatpush1.msra.mxu0 %v248
        %279 = vmatprep.subr.mxu0 0.0
        %280 = vmatpush1.msra.mxu0 %v249
        %281 = vmatprep.subr.mxu0 0.0
        %282 = vmatpush1.msra.mxu0 %v250
        %283 = vmatprep.subr.mxu0 0.0
        %284 = vmatpush1.msra.mxu0 %v251
        %285 = vmatprep.subr.mxu0 0.0
        %286 = vmatpush1.msra.mxu0 0.0
        %287 = vmatprep.subr.mxu0 0.0
        %288 = vmatpush1.msra.mxu0 0.0
        %289 = vmatprep.subr.mxu0 0.0
        %290 = vmatpush1.msra.mxu0 0.0
        %291 = vmatprep.subr.mxu0 0.0
        %292 = vmatpush1.msra.mxu0 0.0
        %293 = vmatprep.subr.mxu0 0.0
        %294 = vmatpush1.msra.mxu0 0.0
        %295 = vmatprep.subr.mxu0 0.0
        %296 = vmatpush1.msra.mxu0 0.0
        %297 = vmatprep.subr.mxu0 0.0
        %298 = vmatpush1.msra.mxu0 0.0
        %299 = vmatprep.subr.mxu0 0.0
        %300 = vmatpush1.msra.mxu0 0.0
        %301 = vmatprep.subr.mxu0 0.0
        %302 = vmatpush1.msra.mxu0 0.0
        %303 = vmatprep.subr.mxu0 0.0
        %304 = vmatpush1.msra.mxu0 0.0
        %305 = vmatprep.subr.mxu0 0.0
        %306 = vmatpush1.msra.mxu0 0.0
        %307 = vmatprep.subr.mxu0 0.0
        %308 = vmatpush1.msra.mxu0 0.0
        %309 = vmatprep.subr.mxu0 0.0
        %310 = vmatpush1.msra.mxu0 0.0
        %311 = vmatprep.subr.mxu0 0.0
        %312 = vmatpush1.msra.mxu0 0.0
        %313 = vmatprep.subr.mxu0 0.0
        %314 = vmatpush1.msra.mxu0 0.0
        %315 = vmatprep.subr.mxu0 0.0
        %316 = vmatpush1.msra.mxu0 0.0
        %317 = vmatprep.mubr.f32.mxu0 0.0
        %318 = vmatmul.mubr.f32.gmra.mrb[0].mxu0 %v235
        %v319 = vpop.f32.mrb[0].mxu0
        %v320 = vadd.f32 %v252, %v319
        %v321 = vpop.f32.mrb[0].mxu0
        %322 = vdwg.mxu0
        %323 = vst [vmem:[%s216] sm:$0xff] %v320
        %s324 = sand.u32 %s116, 1
        %s325 = scalar_lea.sflag [#allocation4], %s324
        %s326 = sand.u32 %s116, 1
        %s327 = smul.addr %s326, 8
        %s328 = scalar_lea.vmem [#allocation7], %s327
        // Predicated region
        $region41: #{_onehot_path.1} parent=31 // pred_check
          %p329 = pneg %p126
        $region42: #{_onehot_path.1} parent=31 // pred_check_branch
          %331 = sbr.rel (%p329) target = $region44
        $region43: #{_onehot_path.1} parent=31 // pred_region
          %s333 = ssub.s32 128, 128
          %334 = vsyncadd %s325, %s333
          %s335 = sadd.s32 %s24, %s23
          %s336 = smul.addr %s335, 128
          %s337 = scalar_lea.hbm %s3, %s336
          %s339 = sshll.u32 %s328, 4
          %s340 = int_to_ptr.vmem [resolvable:$true] %s339
          %342 = dma.vmem_to_hbm [thread:$0]  %s340, 128, %s337, %s325
        $region44: #{_onehot_path.1} parent=31 // pred_fallthru
          _
      $region32: #{_onehot_path.1} parent=5 // pred_fallthru
        _
      %p343 = scmp.le.s32.totalorder 2, %s14
      // Predicated region
      $region45: #{_onehot_path.1} parent=5 // pred_check
        %p344 = pneg %p343
      $region46: #{_onehot_path.1} parent=5 // pred_check_branch
        %346 = sbr.rel (%p344) target = $region48
      $region47: #{_onehot_path.1} parent=5 // pred_region
        %s347 = ssub.s32 %s14, 2
        // Predicated region
        $region49: #{_onehot_path.1} parent=47 // pred_check
          %p348 = pneg %p132
        $region50: #{_onehot_path.1} parent=47 // pred_check_branch
          %350 = sbr.rel (%p348) target = $region52
        $region51: #{_onehot_path.1} parent=47 // pred_region
          %s351 = sand.u32 %s117, 1
          %s352 = scalar_lea.sflag [#allocation4], %s351
          %s353 = sand.u32 %s117, 1
          %s354 = smul.addr %s353, 8
          %s355 = scalar_lea.vmem [#allocation7], %s354
          %356 = dma.done %s352, 128
        $region52: #{_onehot_path.1} parent=47 // pred_fallthru
          _
      $region48: #{_onehot_path.1} parent=5 // pred_fallthru
        _
    $region6: #{_onehot_path.1} parent=1 // loop_footer
      %s18 = sadd.s32 1, %s14
    $region7: #{_onehot_path.1} parent=1 // loop_footer_branch
      %13 = sbr.rel target = $region3
    $region8: #{_onehot_path.1} parent=1 // loop_exit
      _
    %357 = vsyncpa [#allocation3], 1
    %s358 = scalar_lea.sflag [#allocation3], 1
    %359 = vsyncpa %s358, 1
    %360 = vsyncpa [#allocation6], 1
    %361 = vsyncpa [#allocation4], 1
    %s362 = scalar_lea.sflag [#allocation4], 1
    %363 = vsyncpa %s362, 1

// kernel: _onehot_path.1
$region0: #{_onehot_path.1}
  #allocation0 [shape = 'u32[]', space=smem, size = 0x4, offset = 0x4, fixed_abs, tag = 'smem constant byte address 0x4 - core index']
  #allocation1 [shape = 'u32[144,128]{1,0:T(1,128)}', space=vmem, size = 0x12000, scoped, tag = 'internal scratch']
  %s0 = inlined_call_operand.vmem [shape: s32[2,1,8], index: 0, kind: input, shape index: {}]
  %s1 = inlined_call_operand.hbm [shape: f32[128,128], index: 1, kind: input, shape index: {}]
  %s2 = inlined_call_operand.hbm [shape: f32[16,128], index: 2, kind: input, shape index: {}]
  %s3 = inlined_call_operand.hbm [shape: f32[2,8,128], index: 3, kind: output, shape index: {}]
  %s4 = sld [smem:[#allocation0]]
  $region53: #{_onehot_path.1} parent=0
    _
  %s6 = ssub.s32 1, %s4
  %s7 = scalar_select 0, %s6, %s4
  $region1: #{_onehot_path.1} parent=0
    #allocation2 [shape = 'u8[65536]{0}', space=vmem, size = 0x10000, scoped, tag = 'input window, operand 1, single buffered']
    #allocation3 [shape = 's32[2]{0}', space=sflag, size = 0x8, scoped, tag = 'scoped memory for _onehot_path.1']
    #allocation4 [shape = 's32[2]{0}', space=sflag, size = 0x8, scoped, tag = 'scoped memory for _onehot_path.1']
    #allocation5 [shape = 'u8[4096]{0}', space=vmem, size = 0x1000, scoped, tag = 'input window, operand 2, single buffered']
    #allocation6 [shape = 's32[1]{0}', space=sflag, size = 0x4, scoped, tag = 'scoped memory for _onehot_path.1']
    #allocation7 [shape = 'u8[8192]{0}', space=vmem, size = 0x2000, scoped, tag = 'output window, operand 0']
    %8 = vsyncpa [#allocation3], 0
    %9 = vsyncpa [#allocation6], 0
    %10 = vsyncpa [#allocation4], 0
    %s11 = scalar_lea.sflag [#allocation4], 1
    %12 = vsyncpa %s11, 0
    loop: start=0, step=1, limit=4
    $region2: #{_onehot_path.1} parent=1 // loop_pre_header
      _
    $region3: #{_onehot_path.1} parent=1 // loop_header
      %s14 = sphi 0, %s18
      %p15 = scmp.ge.s32.totalorder %s14, 4
      %s21 = sphi 0, %s33
      %s22 = sphi 0, %s29
      %s23 = sphi 0, %s21
      %s24 = sphi 0, %s22
      %s25 = sphi 0, %s23
      %s26 = sphi 0, %s24
      %s38 = sphi 0, %s40
      %s41 = sphi 0, %s38
      %s42 = sphi 0, %s41
      %s58 = sphi 0, %s42
      %s62 = sphi 0, %s62
      %s64 = sphi 0, %s62
      %s65 = sphi 0, %s64
      %s79 = sphi 0, %s65
      %s85 = sphi 0, %s87
      %s88 = sphi 0, %s85
      %s89 = sphi 0, %s88
      %s105 = sphi 0, %s89
      %s113 = sphi 0, %s115
      %s116 = sphi 0, %s113
      %s117 = sphi 0, %s116
      %s133 = sphi 0, %s117
    $region4: #{_onehot_path.1} parent=1 // loop_header_branch
      %17 = sbr.rel (%p15) target = $region8
    $region5: #{_onehot_path.1} parent=1 // loop_body
      %s19 = ssub.s32 %s14, 1
      %s20 = ssub.s32 %s14, 2
      %s27 = sadd.s32 1, %s22
      %p28 = scmp.ge.s32.totalorder %s27, 1
      %s29 = scalar_select %p28, 0, %s27
      %s30 = sadd.s32 1, %s21
      %s31 = scalar_select %p28, %s30, %s21
      %p32 = scmp.ge.s32.totalorder %s31, 2
      %s33 = scalar_select %p32, 0, %s31
      %s34 = ssub.s32 %s21, %s33
      %s35 = ssub.s32 %s22, %s29
      %s36 = sor.u32 %s34, %s35
      %p37 = scmp.eq.s32.totalorder %s36, 0
      %s39 = sadd.s32 %s38, 1
      %s40 = scalar_select %p37, %s38, %s39
      %p43 = pneg %p37
      %p44 = scmp.eq.s32.totalorder %s14, 1
      %p45 = por %p43, %p44
      %p46 = scmp.ne.s32.totalorder %s38, %s41
      %p47 = scmp.eq.s32.totalorder %s14, 0
      %p48 = por %p46, %p47
      %p49 = scmp.ne.s32.totalorder %s38, %s41
      %p50 = scmp.eq.s32.totalorder %s19, 1
      %p51 = por %p49, %p50
      %p52 = scmp.ne.s32.totalorder %s41, %s42
      %p53 = scmp.eq.s32.totalorder %s19, 0
      %p54 = por %p52, %p53
      %p55 = scmp.ne.s32.totalorder %s41, %s42
      %p56 = scmp.eq.s32.totalorder %s20, 1
      %p57 = por %p55, %p56
      %p59 = scmp.ne.s32.totalorder %s42, %s58
      %p60 = scmp.eq.s32.totalorder %s20, 0
      %p61 = por %p59, %p60
      %s63 = sadd.s32 %s62, 1
      %p66 = scmp.eq.s32.totalorder %s14, 1
      %p67 = scmp.ne.s32.totalorder %s62, %s64
      %p68 = scmp.eq.s32.totalorder %s14, 0
      %p69 = por %p67, %p68
      %p70 = scmp.ne.s32.totalorder %s62, %s64
      %p71 = scmp.eq.s32.totalorder %s19, 1
      %p72 = por %p70, %p71
      %p73 = scmp.ne.s32.totalorder %s64, %s65
      %p74 = scmp.eq.s32.totalorder %s19, 0
      %p75 = por %p73, %p74
      %p76 = scmp.ne.s32.totalorder %s64, %s65
      %p77 = scmp.eq.s32.totalorder %s20, 1
      %p78 = por %p76, %p77
      %p80 = scmp.ne.s32.totalorder %s65, %s79
      %p81 = scmp.eq.s32.totalorder %s20, 0
      %p82 = por %p80, %p81
      %s83 = ssub.s32 %s22, %s29
      %p84 = scmp.eq.s32.totalorder %s83, 0
      %s86 = sadd.s32 %s85, 1
      %s87 = scalar_select %p84, %s85, %s86
      %p90 = pneg %p84
      %p91 = scmp.eq.s32.totalorder %s14, 1
      %p92 = por %p90, %p91
      %p93 = scmp.ne.s32.totalorder %s85, %s88
      %p94 = scmp.eq.s32.totalorder %s14, 0
      %p95 = por %p93, %p94
      %p96 = scmp.ne.s32.totalorder %s85, %s88
      %p97 = scmp.eq.s32.totalorder %s19, 1
      %p98 = por %p96, %p97
      %p99 = scmp.ne.s32.totalorder %s88, %s89
      %p100 = scmp.eq.s32.totalorder %s19, 0
      %p101 = por %p99, %p100
      %p102 = scmp.ne.s32.totalorder %s88, %s89
      %p103 = scmp.eq.s32.totalorder %s20, 1
      %p104 = por %p102, %p103
      %p106 = scmp.ne.s32.totalorder %s89, %s105
      %p107 = scmp.eq.s32.totalorder %s20, 0
      %p108 = por %p106, %p107
      %s109 = ssub.s32 %s21, %s33
      %s110 = ssub.s32 %s22, %s29
      %s111 = sor.u32 %s109, %s110
      %p112 = scmp.eq.s32.totalorder %s111, 0
      %s114 = sadd.s32 %s113, 1
      %s115 = scalar_select %p112, %s113, %s114
      %p118 = pneg %p112
      %p119 = scmp.eq.s32.totalorder %s14, 1
      %p120 = por %p118, %p119
      %p121 = scmp.ne.s32.totalorder %s113, %s116
      %p122 = scmp.eq.s32.totalorder %s14, 0
      %p123 = por %p121, %p122
      %p124 = scmp.ne.s32.totalorder %s113, %s116
      %p125 = scmp.eq.s32.totalorder %s19, 1
      %p126 = por %p124, %p125
      %p127 = scmp.ne.s32.totalorder %s116, %s117
      %p128 = scmp.eq.s32.totalorder %s19, 0
      %p129 = por %p127, %p128
      %p130 = scmp.ne.s32.totalorder %s116, %s117
      %p131 = scmp.eq.s32.totalorder %s20, 1
      %p132 = por %p130, %p131
      %p134 = scmp.ne.s32.totalorder %s117, %s133
      %p135 = scmp.eq.s32.totalorder %s20, 0
      %p136 = por %p134, %p135
      %p137 = scmp.le.s32.totalorder 1, %s14
      %p138 = scmp.lt.s32.totalorder %s14, 3
      %p139 = pnand %p137, %p138
      %p140 = pneg %p139
      // Predicated region
      $region9: #{_onehot_path.1} parent=5 // pred_check
        _
      $region10: #{_onehot_path.1} parent=5 // pred_check_branch
        %142 = sbr.rel (%p139) target = $region12
      $region11: #{_onehot_path.1} parent=5 // pred_region
        %s143 = ssub.s32 %s14, 1
        // Predicated region
        $region13: #{_onehot_path.1} parent=11 // pred_check
          %p144 = pneg %p75
        $region14: #{_onehot_path.1} parent=11 // pred_check_branch
          %146 = sbr.rel (%p144) target = $region16
        $region15: #{_onehot_path.1} parent=11 // pred_region
          %s148 = ssub.s32 2048, 2048
          %149 = vsyncadd [#allocation3], %s148
          %s150 = sshll.u32 [#allocation2], 4
          %s151 = int_to_ptr.vmem [resolvable:$true] %s150
          %156 = dma.hbm_to_vmem [thread:$0]  %s1, 2048, %s151, [#allocation3], 128, 128, 8
        $region16: #{_onehot_path.1} parent=11 // pred_fallthru
          _
        // Predicated region
        $region17: #{_onehot_path.1} parent=11 // pred_check
          %p157 = pneg %p101
        $region18: #{_onehot_path.1} parent=11 // pred_check_branch
          %159 = sbr.rel (%p157) target = $region20
        $region19: #{_onehot_path.1} parent=11 // pred_region
          %s161 = ssub.s32 128, 128
          %162 = vsyncadd [#allocation6], %s161
          %s163 = smul.addr %s24, 128
          %s164 = scalar_lea.hbm %s2, %s163
          %s166 = sshll.u32 [#allocation5], 4
          %s167 = int_to_ptr.vmem [resolvable:$true] %s166
          %169 = dma.hbm_to_vmem [thread:$0]  %s164, 128, %s167, [#allocation6]
        $region20: #{_onehot_path.1} parent=11 // pred_fallthru
          _
      $region12: #{_onehot_path.1} parent=5 // pred_fallthru
        _
      %p170 = scmp.lt.s32.totalorder %s14, 2
      // Predicated region
      $region21: #{_onehot_path.1} parent=5 // pred_check
        %p171 = pneg %p170
      $region22: #{_onehot_path.1} parent=5 // pred_check_branch
        %173 = sbr.rel (%p171) target = $region24
      $region23: #{_onehot_path.1} parent=5 // pred_region
        // Predicated region
        $region25: #{_onehot_path.1} parent=23 // pred_check
          %p174 = pneg %p48
        $region26: #{_onehot_path.1} parent=23 // pred_check_branch
          %176 = sbr.rel (%p174) target = $region28
        $region27: #{_onehot_path.1} parent=23 // pred_region
          %p177 = scmp.lt.s32.totalorder %s21, 1
          %s178 = scalar_select %p177, %s21, 1
          %p179 = scmp.lt.s32.totalorder %s22, 0
          %s180 = scalar_select %p179, %s22, 0
          %s181 = sadd.s32 %s180, %s178
          %s182 = scalar_lea.vmem %s0, %s181
        $region28: #{_onehot_path.1} parent=23 // pred_fallthru
          _
      $region24: #{_onehot_path.1} parent=5 // pred_fallthru
        _
      %p183 = scmp.le.s32.totalorder 1, %s14
      %p184 = scmp.lt.s32.totalorder %s14, 3
      %p185 = pnand %p183, %p184
      %p186 = pneg %p185
      // Predicated region
      $region29: #{_onehot_path.1} parent=5 // pred_check
        _
      $region30: #{_onehot_path.1} parent=5 // pred_check_branch
        %188 = sbr.rel (%p185) target = $region32
      $region31: #{_onehot_path.1} parent=5 // pred_region
        %s189 = ssub.s32 %s14, 1
        // Predicated region
        $region33: #{_onehot_path.1} parent=31 // pred_check
          %p190 = pneg %p75
        $region34: #{_onehot_path.1} parent=31 // pred_check_branch
          %192 = sbr.rel (%p190) target = $region36
        $region35: #{_onehot_path.1} parent=31 // pred_region
          %193 = dma.done [#allocation3], 2048
        $region36: #{_onehot_path.1} parent=31 // pred_fallthru
          _
        // Predicated region
        $region37: #{_onehot_path.1} parent=31 // pred_check
          %p194 = pneg %p101
        $region38: #{_onehot_path.1} parent=31 // pred_check_branch
          %196 = sbr.rel (%p194) target = $region40
        $region39: #{_onehot_path.1} parent=31 // pred_region
          %197 = dma.done [#allocation6], 128
        $region40: #{_onehot_path.1} parent=31 // pred_fallthru
          _
        %p198 = scmp.lt.s32.totalorder %s23, 1
        %s199 = scalar_select %p198, %s23, 1
        %p200 = scmp.lt.s32.totalorder %s24, 0
        %s201 = scalar_select %p200, %s24, 0
        %s202 = sadd.s32 %s201, %s199
        %s203 = scalar_lea.vmem %s0, %s202
        %p204 = pneg %p54
        %p205 = pneg %p51
        %p206 = pneg %p75
        %p207 = pneg %p72
        %p208 = pneg %p101
        %p209 = pneg %p98
        %p210 = pneg %p129
        %p211 = pneg %p126
        %s212 = sand.u32 %s116, 1
        %s213 = scalar_lea.sflag [#allocation4], %s212
        %s214 = sand.u32 %s116, 1
        %s215 = smul.addr %s214, 8
        %s216 = scalar_lea.vmem [#allocation7], %s215
        %p217 = scmp.lt.s32.totalorder %s23, 1
        %s218 = scalar_select %p217, %s23, 1
        %p219 = scmp.lt.s32.totalorder %s24, 0
        %s220 = scalar_select %p219, %s24, 0
        %s221 = sadd.s32 %s220, %s218
        %s222 = scalar_lea.vmem %s0, %s221
        %v223 = vld [vmem:[%s222] sm:$0x1]
        %v224 = vlaneseq
        %v225 = vand.u32 %v224, 127
        %v226 = vlaneseq
        %v227 = vshrl.u32 %v226, 7
        %v228 = vsub.s32 0, %v227
        %v229 = vrot.slane %v223, %v228
        %231 = vbcast.lane.b32.xlu0 %v229, 256
        %v232 = vpop.permute.xlu0 %231
        %vm233 = vcmp.eq.s32.totalorder %v225, %v232
        %v234 = vsel %vm233, 1, 0
        %v235 = vcvt.s32.f32 %v234
        %v236 = vld [vmem:[#allocation2] sm:$0xff]
        %v237 = vld [vmem:[#allocation2 + $0x8] sm:$0xff]
        %v238 = vld [vmem:[#allocation2 + $0x10] sm:$0xff]
        %v239 = vld [vmem:[#allocation2 + $0x18] sm:$0xff]
        %v240 = vld [vmem:[#allocation2 + $0x20] sm:$0xff]
        %v241 = vld [vmem:[#allocation2 + $0x28] sm:$0xff]
        %v242 = vld [vmem:[#allocation2 + $0x30] sm:$0xff]
        %v243 = vld [vmem:[#allocation2 + $0x38] sm:$0xff]
        %v244 = vld [vmem:[#allocation2 + $0x40] sm:$0xff]
        %v245 = vld [vmem:[#allocation2 + $0x48] sm:$0xff]
        %v246 = vld [vmem:[#allocation2 + $0x50] sm:$0xff]
        %v247 = vld [vmem:[#allocation2 + $0x58] sm:$0xff]
        %v248 = vld [vmem:[#allocation2 + $0x60] sm:$0xff]
        %v249 = vld [vmem:[#allocation2 + $0x68] sm:$0xff]
        %v250 = vld [vmem:[#allocation2 + $0x70] sm:$0xff]
        %v251 = vld [vmem:[#allocation2 + $0x78] sm:$0xff]
        %v252 = vld [vmem:[#allocation5] sm:$0xff]
        %253 = vmatprep.subr.mxu0 0.0
        %254 = vmatpush1.msra.mxu0 %v236
        %255 = vmatprep.subr.mxu0 0.0
        %256 = vmatpush1.msra.mxu0 %v237
        %257 = vmatprep.subr.mxu0 0.0
        %258 = vmatpush1.msra.mxu0 %v238
        %259 = vmatprep.subr.mxu0 0.0
        %260 = vmatpush1.msra.mxu0 %v239
        %261 = vmatprep.subr.mxu0 0.0
        %262 = vmatpush1.msra.mxu0 %v240
        %263 = vmatprep.subr.mxu0 0.0
        %264 = vmatpush1.msra.mxu0 %v241
        %265 = vmatprep.subr.mxu0 0.0
        %266 = vmatpush1.msra.mxu0 %v242
        %267 = vmatprep.subr.mxu0 0.0
        %268 = vmatpush1.msra.mxu0 %v243
        %269 = vmatprep.subr.mxu0 0.0
        %270 = vmatpush1.msra.mxu0 %v244
        %271 = vmatprep.subr.mxu0 0.0
        %272 = vmatpush1.msra.mxu0 %v245
        %273 = vmatprep.subr.mxu0 0.0
        %274 = vmatpush1.msra.mxu0 %v246
        %275 = vmatprep.subr.mxu0 0.0
        %276 = vmatpush1.msra.mxu0 %v247
        %277 = vmatprep.subr.mxu0 0.0
        %278 = vmatpush1.msra.mxu0 %v248
        %279 = vmatprep.subr.mxu0 0.0
        %280 = vmatpush1.msra.mxu0 %v249
        %281 = vmatprep.subr.mxu0 0.0
        %282 = vmatpush1.msra.mxu0 %v250
        %283 = vmatprep.subr.mxu0 0.0
        %284 = vmatpush1.msra.mxu0 %v251
        %285 = vmatprep.subr.mxu0 0.0
        %286 = vmatpush1.msra.mxu0 0.0
        %287 = vmatprep.subr.mxu0 0.0
        %288 = vmatpush1.msra.mxu0 0.0
        %289 = vmatprep.subr.mxu0 0.0
        %290 = vmatpush1.msra.mxu0 0.0
        %291 = vmatprep.subr.mxu0 0.0
        %292 = vmatpush1.msra.mxu0 0.0
        %293 = vmatprep.subr.mxu0 0.0
        %294 = vmatpush1.msra.mxu0 0.0
        %295 = vmatprep.subr.mxu0 0.0
        %296 = vmatpush1.msra.mxu0 0.0
        %297 = vmatprep.subr.mxu0 0.0
        %298 = vmatpush1.msra.mxu0 0.0
        %299 = vmatprep.subr.mxu0 0.0
        %300 = vmatpush1.msra.mxu0 0.0
        %301 = vmatprep.subr.mxu0 0.0
        %302 = vmatpush1.msra.mxu0 0.0
        %303 = vmatprep.subr.mxu0 0.0
        %304 = vmatpush1.msra.mxu0 0.0
        %305 = vmatprep.subr.mxu0 0.0
        %306 = vmatpush1.msra.mxu0 0.0
        %307 = vmatprep.subr.mxu0 0.0
        %308 = vmatpush1.msra.mxu0 0.0
        %309 = vmatprep.subr.mxu0 0.0
        %310 = vmatpush1.msra.mxu0 0.0
        %311 = vmatprep.subr.mxu0 0.0
        %312 = vmatpush1.msra.mxu0 0.0
        %313 = vmatprep.subr.mxu0 0.0
        %314 = vmatpush1.msra.mxu0 0.0
        %315 = vmatprep.subr.mxu0 0.0
        %316 = vmatpush1.msra.mxu0 0.0
        %317 = vmatprep.mubr.f32.mxu0 0.0
        %318 = vmatmul.mubr.f32.gmra.mrb[0].mxu0 %v235
        %v319 = vpop.f32.mrb[0].mxu0
        %v320 = vadd.f32 %v252, %v319
        %v321 = vpop.f32.mrb[0].mxu0
        %322 = vdwg.mxu0
        %323 = vst [vmem:[%s216] sm:$0xff] %v320
        %s324 = sand.u32 %s116, 1
        %s325 = scalar_lea.sflag [#allocation4], %s324
        %s326 = sand.u32 %s116, 1
        %s327 = smul.addr %s326, 8
        %s328 = scalar_lea.vmem [#allocation7], %s327
        // Predicated region
        $region41: #{_onehot_path.1} parent=31 // pred_check
          %p329 = pneg %p126
        $region42: #{_onehot_path.1} parent=31 // pred_check_branch
          %331 = sbr.rel (%p329) target = $region44
        $region43: #{_onehot_path.1} parent=31 // pred_region
          %s333 = ssub.s32 128, 128
          %334 = vsyncadd %s325, %s333
          %s335 = sadd.s32 %s24, %s23
          %s336 = smul.addr %s335, 128
          %s337 = scalar_lea.hbm %s3, %s336
          %s339 = sshll.u32 %s328, 4
          %s340 = int_to_ptr.vmem [resolvable:$true] %s339
          %342 = dma.vmem_to_hbm [thread:$0]  %s340, 128, %s337, %s325
        $region44: #{_onehot_path.1} parent=31 // pred_fallthru
          _
      $region32: #{_onehot_path.1} parent=5 // pred_fallthru
        _
      %p343 = scmp.le.s32.totalorder 2, %s14
      // Predicated region
      $region45: #{_onehot_path.1} parent=5 // pred_check
        %p344 = pneg %p343
      $region46: #{_onehot_path.1} parent=5 // pred_check_branch
        %346 = sbr.rel (%p344) target = $region48
      $region47: #{_onehot_path.1} parent=5 // pred_region
        %s347 = ssub.s32 %s14, 2
        // Predicated region
        $region49: #{_onehot_path.1} parent=47 // pred_check
          %p348 = pneg %p132
        $region50: #{_onehot_path.1} parent=47 // pred_check_branch
          %350 = sbr.rel (%p348) target = $region52
        $region51: #{_onehot_path.1} parent=47 // pred_region
          %s351 = sand.u32 %s117, 1
          %s352 = scalar_lea.sflag [#allocation4], %s351
          %s353 = sand.u32 %s117, 1
          %s354 = smul.addr %s353, 8
          %s355 = scalar_lea.vmem [#allocation7], %s354
          %356 = dma.done %s352, 128
        $region52: #{_onehot_path.1} parent=47 // pred_fallthru
          _
      $region48: #{_onehot_path.1} parent=5 // pred_fallthru
        _
    $region6: #{_onehot_path.1} parent=1 // loop_footer
      %s18 = sadd.s32 1, %s14
    $region7: #{_onehot_path.1} parent=1 // loop_footer_branch
      %13 = sbr.rel target = $region3
    $region8: #{_onehot_path.1} parent=1 // loop_exit
      _
    %357 = vsyncpa [#allocation3], 1
    %s358 = scalar_lea.sflag [#allocation3], 1
    %359 = vsyncpa %s358, 1
    %360 = vsyncpa [#allocation6], 1
    %361 = vsyncpa [#allocation4], 1
    %s362 = scalar_lea.sflag [#allocation4], 1
    %363 = vsyncpa %s362, 1

</llo_original>
